<compile_context>
chip_gen: v5e
topology: v5e:2x2
jax: 0.10.0
libtpu: 0.0.40
codegen_flags: <defaults>
</compile_context>

<pallas_src>
import jax
import jax.numpy as jnp
from jax.experimental import pallas as pl
from jax.experimental.pallas import tpu as pltpu


def _se_kernel(x_ref, w1_ref, w2_ref, o_ref):
    """One batch block of SE.

    x_ref / o_ref: (Bt, C, HW)  -- NCHW with spatial flattened onto lanes.
    w1_ref: (C, Cr), w2_ref: (Cr, C) -- VMEM resident (constant block index).
    """
    x = x_ref[...]                                        # single tile read (I/O dtype)
    hw = x.shape[-1]

    # Squeeze: global average pool over the lane (spatial) axis, f32 accumulation.
    pooled = jnp.sum(x.astype(jnp.float32), axis=-1) * (1.0 / hw)      # (Bt, C)

    # Excitation: FC -> ReLU -> FC -> sigmoid, all in f32 (MXU / VPU / EUP).
    h = jnp.dot(pooled, w1_ref[...].astype(jnp.float32),
                preferred_element_type=jnp.float32)
    h = jnp.maximum(h, 0.0)
    g = jnp.dot(h, w2_ref[...].astype(jnp.float32),
                preferred_element_type=jnp.float32)
    g = jax.nn.sigmoid(g)                                 # (Bt, C)

    # Scale: per-channel gate broadcast along the lane (spatial) axis.
    # Single vld -> vmul -> vst pass in the I/O dtype (no full-tile f32 copy).
    o_ref[...] = x * g.astype(o_ref.dtype)[:, :, None]


def _vmem_capacity_bytes():
    try:
        return int(pltpu.get_tpu_info().vmem_capacity_bytes)
    except Exception:
        return 64 << 20                  # conservative floor (v7x per-TC VMEM)


def _num_tensorcores():
    try:
        kind = jax.devices()[0].device_kind.lower()
    except Exception:
        return 1
    return 2 if "7" in kind else 1       # v7x-class chips have 2 TCs per chip


def _pick_batch_block(B, per_batch_io_bytes, per_batch_f32_bytes,
                      vmem_budget_bytes, num_cores, target_block_bytes):
    """Largest batch block that (a) fits double-buffered in VMEM, (b) stays near
    the per-block byte target, (c) leaves >=4 grid steps on multi-TC parts."""
    # Per extra batch row: double-buffered input + output blocks + f32 pool temp.
    per_batch_cost = 4 * per_batch_io_bytes + per_batch_f32_bytes
    bt_vmem = max(1, vmem_budget_bytes // max(1, per_batch_cost))
    bt_tgt = max(1, target_block_bytes // max(1, per_batch_io_bytes))
    bt = max(1, min(B, bt_vmem, bt_tgt))
    if num_cores > 1 and B >= 4:
        bt = min(bt, max(1, B // 4))     # >= 4 grid steps for 2 TensorCores
    # Prefer a divisor of B (no ragged tail) if it costs < ~25% of the block.
    for cand in range(bt, 0, -1):
        if B % cand == 0:
            if 4 * cand >= 3 * bt:
                bt = cand
            break
    return max(1, bt)


def se_layer(x, w1, w2, block_b=None):
    """x: (B, C, H, W) NCHW (f32 or bf16). w1: (C, C//r). w2: (C//r, C).

    NOTE: PyTorch nn.Linear stores weights as (out, in); pass weight.T here.
    """
    B, C, H, W = x.shape
    HW = H * W
    if (w1.ndim != 2 or w2.ndim != 2 or w1.shape[0] != C or w2.shape[1] != C
            or w1.shape[1] != w2.shape[0]):
        raise ValueError(
            "Expected w1:(C, C//r) and w2:(C//r, C) (PyTorch Linear weights "
            f"must be transposed). Got w1={w1.shape}, w2={w2.shape}, C={C}.")
    Cr = w1.shape[1]

    # NCHW stays as-is: flattening (H, W) -> HW on a contiguous array is free,
    # so the wrapper adds no extra HBM passes. (HW a multiple of 128 keeps the
    # store stream lane-dense; smaller HW still compiles, just masked stores.)
    x3 = x.reshape(B, C, HW)

    itemsize = jnp.dtype(x.dtype).itemsize
    w_itemsize = jnp.dtype(w1.dtype).itemsize
    per_batch_io = C * HW * itemsize
    per_batch_f32 = C * HW * 4
    w_bytes = (C * Cr + Cr * C) * w_itemsize

    vmem_cap = _vmem_capacity_bytes()
    headroom = 8 << 20
    budget = max(8 << 20, vmem_cap - headroom - 2 * w_bytes - (2 << 20))

    num_cores = _num_tensorcores()
    if block_b is None:
        target = 8 << 20 if num_cores > 1 else 4 << 20
        block_b = _pick_batch_block(B, per_batch_io, per_batch_f32, budget,
                                    num_cores, target)
    Bt = max(1, min(int(block_b), B))

    block_bytes = Bt * per_batch_io
    vmem_needed = 4 * block_bytes + Bt * per_batch_f32 + 2 * w_bytes + (2 << 20)
    # TODO(synk): if a single batch row exceeds the VMEM budget, add an HW grid
    # axis (pool accumulated across it, scale applied on a second sweep).
    vmem_limit = int(min(max(vmem_needed, 32 << 20),
                         max(vmem_cap - headroom, 32 << 20)))

    n_steps = pl.cdiv(B, Bt)

    cost = pl.CostEstimate(
        flops=int(2 * B * HW * C + 4 * B * C * Cr),   # pool adds + scale + 2 FCs
        transcendentals=int(B * C),                   # sigmoid
        bytes_accessed=int(2 * B * HW * C * itemsize + w_bytes),
    )

    out3 = pl.pallas_call(
        _se_kernel,
        out_shape=jax.ShapeDtypeStruct((B, C, HW), x.dtype),
        grid_spec=pltpu.PrefetchScalarGridSpec(
            num_scalar_prefetch=0,
            grid=(n_steps,),
            in_specs=[
                pl.BlockSpec((Bt, C, HW), lambda b: (b, 0, 0)),
                # Weights: constant block index -> fetched once, VMEM resident.
                pl.BlockSpec((C, Cr), lambda b: (0, 0)),
                pl.BlockSpec((Cr, C), lambda b: (0, 0)),
            ],
            out_specs=pl.BlockSpec((Bt, C, HW), lambda b: (b, 0, 0)),
        ),
        compiler_params=pltpu.CompilerParams(
            dimension_semantics=("parallel",),
            vmem_limit_bytes=vmem_limit,
        ),
        cost_estimate=cost,
    )(x3, w1, w2)

    return out3.reshape(B, C, H, W)


def se_layer_ref(x, w1, w2):
    """Pure-JAX reference mirroring the PyTorch module (f32 math)."""
    xf = x.astype(jnp.float32)
    y = jnp.mean(xf, axis=(2, 3))                      # (B, C)
    y = jnp.maximum(y @ w1, 0.0)                       # (B, C//r)
    y = jax.nn.sigmoid(y @ w2)                         # (B, C)
    return xf * y[:, :, None, None]


if __name__ == "__main__":
    B, C, H, W = 4, 64, 16, 16
    reduction = 16
    Cr = C // reduction

    key = jax.random.PRNGKey(0)
    kx, kx2, k1, k2 = jax.random.split(key, 4)

    x = jax.random.normal(kx, (B, C, H, W), dtype=jnp.float32)
    # nn.Linear(C, C//r) / nn.Linear(C//r, C) (bias-free) weights, stored
    # already-transposed as (in, out) for right-multiply.
    w1 = jax.random.normal(k1, (C, Cr), dtype=jnp.float32) * (1.0 / C ** 0.5)
    w2 = jax.random.normal(k2, (Cr, C), dtype=jnp.float32) * (1.0 / Cr ** 0.5)

    # f32 I/O path: tight tolerance vs reference.
    out = jax.block_until_ready(se_layer(x, w1, w2))
    ref = se_layer_ref(x, w1, w2)
    assert out.shape == (B, C, H, W)
    assert jnp.allclose(out, ref, atol=1e-5, rtol=1e-5), "f32 mismatch vs reference"

    # bf16 I/O path (gate math stays f32 in-kernel); tolerance covers the
    # bf16 rounding of the gate and the product.
    x_bf16 = x.astype(jnp.bfloat16)
    out_bf16 = jax.block_until_ready(se_layer(x_bf16, w1, w2))
    ref_bf16 = se_layer_ref(x_bf16, w1, w2)
    assert out_bf16.dtype == jnp.bfloat16
    assert jnp.allclose(out_bf16.astype(jnp.float32), ref_bf16,
                        atol=6e-2, rtol=6e-2), "bf16 mismatch vs reference"

    # Ragged batch: Bt does not divide B -> cdiv grid, tail block padded/masked.
    B2 = 5
    x2 = jax.random.normal(kx2, (B2, C, H, W), dtype=jnp.float32)
    out2 = jax.block_until_ready(se_layer(x2, w1, w2, block_b=2))
    ref2 = se_layer_ref(x2, w1, w2)
    assert jnp.allclose(out2, ref2, atol=1e-5, rtol=1e-5), "tail-block mismatch"

    print("KERNEL_OK")
</pallas_src>

<mosaic_0001>
module attributes {stable_mosaic.version = 11 : i64} {
  func.func @_se_kernel(%arg0: i32, %arg1: memref<4x64x256xf32, #tpu.memory_space<vmem>>, %arg2: memref<64x4xf32, #tpu.memory_space<vmem>>, %arg3: memref<4x64xf32, #tpu.memory_space<vmem>>, %arg4: memref<4x64x256xf32, #tpu.memory_space<vmem>>) attributes {dimension_semantics = [#tpu.dimension_semantics<parallel>], iteration_bounds = array<i64: 1>, scalar_prefetch = 0 : i64, scratch_operands = 0 : i64, tpu.core_type = #tpu.core_type<tc>, window_params = [{transform_indices = @transform_0, window_bounds = array<i64: 4, 64, 256>}, {pipeline_mode = #tpu.pipeline_mode<synchronous>, transform_indices = @transform_1, window_bounds = array<i64: 64, 4>}, {pipeline_mode = #tpu.pipeline_mode<synchronous>, transform_indices = @transform_2, window_bounds = array<i64: 4, 64>}, {transform_indices = @transform_3, window_bounds = array<i64: 4, 64, 256>}]} {
    %c0 = arith.constant 0 : index
    %c0_0 = arith.constant 0 : index
    %c0_1 = arith.constant 0 : index
    %0 = vector.load %arg1[%c0, %c0_0, %c0_1] : memref<4x64x256xf32, #tpu.memory_space<vmem>>, vector<4x64x256xf32>
    %cst = arith.constant dense<0.000000e+00> : vector<4x64xf32>
    %1 = vector.multi_reduction <add>, %0, %cst [2] : vector<4x64x256xf32> to vector<4x64xf32>
    %cst_2 = arith.constant 3.906250e-03 : f32
    %2 = vector.broadcast %cst_2 : f32 to vector<4x64xf32>
    %3 = arith.mulf %1, %2 : vector<4x64xf32>
    %c0_3 = arith.constant 0 : index
    %c0_4 = arith.constant 0 : index
    %4 = vector.load %arg2[%c0_3, %c0_4] : memref<64x4xf32, #tpu.memory_space<vmem>>, vector<64x4xf32>
    %cst_5 = arith.constant dense<0.000000e+00> : vector<4x4xf32>
    %5 = tpu.matmul %3, %4, %cst_5 {dimension_numbers = #tpu.dot_dimension_numbers<[1], [0], [0], [1], [0, 0, 1, 1], [], []>} : vector<4x64xf32>, vector<64x4xf32>, vector<4x4xf32> -> vector<4x4xf32>
    %cst_6 = arith.constant 0.000000e+00 : f32
    %6 = vector.broadcast %cst_6 : f32 to vector<4x4xf32>
    %7 = arith.maximumf %5, %6 : vector<4x4xf32>
    %c0_7 = arith.constant 0 : index
    %c0_8 = arith.constant 0 : index
    %8 = vector.load %arg3[%c0_7, %c0_8] : memref<4x64xf32, #tpu.memory_space<vmem>>, vector<4x64xf32>
    %cst_9 = arith.constant dense<0.000000e+00> : vector<4x64xf32>
    %9 = tpu.matmul %7, %8, %cst_9 {dimension_numbers = #tpu.dot_dimension_numbers<[1], [0], [0], [1], [0, 0, 1, 1], [], []>} : vector<4x4xf32>, vector<4x64xf32>, vector<4x64xf32> -> vector<4x64xf32>
    %10 = arith.negf %9 : vector<4x64xf32>
    %11 = math.exp %10 : vector<4x64xf32>
    %cst_10 = arith.constant 1.000000e+00 : f32
    %12 = vector.broadcast %cst_10 : f32 to vector<4x64xf32>
    %13 = arith.addf %12, %11 : vector<4x64xf32>
    %14 = arith.divf %12, %13 : vector<4x64xf32>
    %15 = vector.shape_cast %14 : vector<4x64xf32> to vector<4x64x1xf32>
    %16 = vector.broadcast %15 : vector<4x64x1xf32> to vector<4x64x256xf32>
    %17 = arith.mulf %0, %16 : vector<4x64x256xf32>
    %c0_11 = arith.constant 0 : index
    %c0_12 = arith.constant 0 : index
    %c0_13 = arith.constant 0 : index
    %18 = vector.load %arg4[%c0_11, %c0_12, %c0_13] : memref<4x64x256xf32, #tpu.memory_space<vmem>>, vector<4x64x256xf32>
    tpu.vector_store %arg4[%c0_11, %c0_12, %c0_13], %17 {strides = array<i32>} : memref<4x64x256xf32, #tpu.memory_space<vmem>>, vector<4x64x256xf32>,
    return
  }
  func.func @transform_0(%arg0: i32) -> (i32, i32, i32) {
    %c0_i32 = arith.constant 0 : i32
    %c0_i32_0 = arith.constant 0 : i32
    %c0_i32_1 = arith.constant 0 : i32
    return %arg0, %c0_i32, %c0_i32_0 : i32, i32, i32
  }
  func.func @transform_1(%arg0: i32) -> (i32, i32) {
    %c0_i32 = arith.constant 0 : i32
    %c0_i32_0 = arith.constant 0 : i32
    %c0_i32_1 = arith.constant 0 : i32
    return %c0_i32, %c0_i32_0 : i32, i32
  }
  func.func @transform_2(%arg0: i32) -> (i32, i32) {
    %c0_i32 = arith.constant 0 : i32
    %c0_i32_0 = arith.constant 0 : i32
    %c0_i32_1 = arith.constant 0 : i32
    return %c0_i32, %c0_i32_0 : i32, i32
  }
  func.func @transform_3(%arg0: i32) -> (i32, i32, i32) {
    %c0_i32 = arith.constant 0 : i32
    %c0_i32_0 = arith.constant 0 : i32
    %c0_i32_1 = arith.constant 0 : i32
    return %arg0, %c0_i32, %c0_i32_0 : i32, i32, i32
  }
}

</mosaic_0001>

<llo_original>
// kernel: tpu_custom_call.1
$region0: #{tpu_custom_call.1}
  #allocation0 [shape = 'u32[]', space=smem, size = 0x4, offset = 0x4, fixed_abs, tag = 'smem constant byte address 0x4 - core index']
  #allocation1 [shape = 'u32[72,128]{1,0:T(1,128)}', space=vmem, size = 0x9000, scoped, tag = 'internal scratch']
  %s0 = inlined_call_operand.hbm [shape: f32[4,64,256], index: 0, kind: input, shape index: {}]
  %s1 = inlined_call_operand.vmem [shape: f32[64,4], index: 1, kind: input, shape index: {}]
  %s2 = inlined_call_operand.vmem [shape: f32[4,64], index: 2, kind: input, shape index: {}]
  %s3 = inlined_call_operand.hbm [shape: f32[4,64,256], index: 3, kind: output, shape index: {}]
  %s4 = sld [smem:[#allocation0]]
  $region26: #{tpu_custom_call.1} parent=0
    _
  %s6 = ssub.s32 1, %s4
  %s7 = scalar_select 0, %s6, %s4
  $region1: #{tpu_custom_call.1} parent=0
    #allocation2 [shape = 'u8[262144]{0}', space=vmem, size = 0x40000, scoped, tag = 'input window, operand 0, single buffered']
    #allocation3 [shape = 's32[1]{0}', space=sflag, size = 0x4, scoped, tag = 'scoped memory for tpu_custom_call.1']
    #allocation4 [shape = 's32[1]{0}', space=sflag, size = 0x4, scoped, tag = 'scoped memory for tpu_custom_call.1']
    #allocation5 [shape = 'u8[262144]{0}', space=vmem, size = 0x40000, scoped, tag = 'output window, operand 0, single buffered']
    %8 = vsyncpa [#allocation3], 0
    %9 = vsyncpa [#allocation4], 0
    // Predicated region
    $region2: #{tpu_custom_call.1} parent=1 // pred_check
      _
    $region3: #{tpu_custom_call.1} parent=1 // pred_check_branch
      %11 = sbr.rel (0) target = $region5
    $region4: #{tpu_custom_call.1} parent=1 // pred_region
      %13 = vsyncadd [#allocation3], 0
      %s14 = sshll.u32 %s0, 4
      %s15 = int_to_ptr.hbm [resolvable:$true] %s14
      %s16 = sshll.u32 [#allocation2], 4
      %s17 = int_to_ptr.vmem [resolvable:$true] %s16
      %22 = dma.hbm_to_vmem [thread:$0]  %s15, 8192, %s17, [#allocation3], 256, 256, 16
    $region5: #{tpu_custom_call.1} parent=1 // pred_fallthru
      _
    // Predicated region
    $region6: #{tpu_custom_call.1} parent=1 // pred_check
      _
    $region7: #{tpu_custom_call.1} parent=1 // pred_check_branch
      %24 = sbr.rel (0) target = $region9
    $region8: #{tpu_custom_call.1} parent=1 // pred_region
      _
    $region9: #{tpu_custom_call.1} parent=1 // pred_fallthru
      _
    // Predicated region
    $region10: #{tpu_custom_call.1} parent=1 // pred_check
      _
    $region11: #{tpu_custom_call.1} parent=1 // pred_check_branch
      %26 = sbr.rel (0) target = $region13
    $region12: #{tpu_custom_call.1} parent=1 // pred_region
      _
    $region13: #{tpu_custom_call.1} parent=1 // pred_fallthru
      _
    // Predicated region
    $region14: #{tpu_custom_call.1} parent=1 // pred_check
      _
    $region15: #{tpu_custom_call.1} parent=1 // pred_check_branch
      %28 = sbr.rel (0) target = $region17
    $region16: #{tpu_custom_call.1} parent=1 // pred_region
      %30 = dma.done [#allocation3], 8192
    $region17: #{tpu_custom_call.1} parent=1 // pred_fallthru
      _
    %v31 = vld [vmem:[#allocation2] sm:$0xff]
    %v32 = vld [vmem:[#allocation2 + $0x8] sm:$0xff]
    %v33 = vld [vmem:[#allocation2 + $0x10] sm:$0xff]
    %v34 = vld [vmem:[#allocation2 + $0x18] sm:$0xff]
    %v35 = vld [vmem:[#allocation2 + $0x20] sm:$0xff]
    %v36 = vld [vmem:[#allocation2 + $0x28] sm:$0xff]
    %v37 = vld [vmem:[#allocation2 + $0x30] sm:$0xff]
    %v38 = vld [vmem:[#allocation2 + $0x38] sm:$0xff]
    %v39 = vld [vmem:[#allocation2 + $0x40] sm:$0xff]
    %v40 = vld [vmem:[#allocation2 + $0x48] sm:$0xff]
    %v41 = vld [vmem:[#allocation2 + $0x50] sm:$0xff]
    %v42 = vld [vmem:[#allocation2 + $0x58] sm:$0xff]
    %v43 = vld [vmem:[#allocation2 + $0x60] sm:$0xff]
    %v44 = vld [vmem:[#allocation2 + $0x68] sm:$0xff]
    %v45 = vld [vmem:[#allocation2 + $0x70] sm:$0xff]
    %v46 = vld [vmem:[#allocation2 + $0x78] sm:$0xff]
    %v47 = vld [vmem:[#allocation2 + $0x80] sm:$0xff]
    %v48 = vld [vmem:[#allocation2 + $0x88] sm:$0xff]
    %v49 = vld [vmem:[#allocation2 + $0x90] sm:$0xff]
    %v50 = vld [vmem:[#allocation2 + $0x98] sm:$0xff]
    %v51 = vld [vmem:[#allocation2 + $0xa0] sm:$0xff]
    %v52 = vld [vmem:[#allocation2 + $0xa8] sm:$0xff]
    %v53 = vld [vmem:[#allocation2 + $0xb0] sm:$0xff]
    %v54 = vld [vmem:[#allocation2 + $0xb8] sm:$0xff]
    %v55 = vld [vmem:[#allocation2 + $0xc0] sm:$0xff]
    %v56 = vld [vmem:[#allocation2 + $0xc8] sm:$0xff]
    %v57 = vld [vmem:[#allocation2 + $0xd0] sm:$0xff]
    %v58 = vld [vmem:[#allocation2 + $0xd8] sm:$0xff]
    %v59 = vld [vmem:[#allocation2 + $0xe0] sm:$0xff]
    %v60 = vld [vmem:[#allocation2 + $0xe8] sm:$0xff]
    %v61 = vld [vmem:[#allocation2 + $0xf0] sm:$0xff]
    %v62 = vld [vmem:[#allocation2 + $0xf8] sm:$0xff]
    %v63 = vld [vmem:[#allocation2 + $0x100] sm:$0xff]
    %v64 = vld [vmem:[#allocation2 + $0x108] sm:$0xff]
    %v65 = vld [vmem:[#allocation2 + $0x110] sm:$0xff]
    %v66 = vld [vmem:[#allocation2 + $0x118] sm:$0xff]
    %v67 = vld [vmem:[#allocation2 + $0x120] sm:$0xff]
    %v68 = vld [vmem:[#allocation2 + $0x128] sm:$0xff]
    %v69 = vld [vmem:[#allocation2 + $0x130] sm:$0xff]
    %v70 = vld [vmem:[#allocation2 + $0x138] sm:$0xff]
    %v71 = vld [vmem:[#allocation2 + $0x140] sm:$0xff]
    %v72 = vld [vmem:[#allocation2 + $0x148] sm:$0xff]
    %v73 = vld [vmem:[#allocation2 + $0x150] sm:$0xff]
    %v74 = vld [vmem:[#allocation2 + $0x158] sm:$0xff]
    %v75 = vld [vmem:[#allocation2 + $0x160] sm:$0xff]
    %v76 = vld [vmem:[#allocation2 + $0x168] sm:$0xff]
    %v77 = vld [vmem:[#allocation2 + $0x170] sm:$0xff]
    %v78 = vld [vmem:[#allocation2 + $0x178] sm:$0xff]
    %v79 = vld [vmem:[#allocation2 + $0x180] sm:$0xff]
    %v80 = vld [vmem:[#allocation2 + $0x188] sm:$0xff]
    %v81 = vld [vmem:[#allocation2 + $0x190] sm:$0xff]
    %v82 = vld [vmem:[#allocation2 + $0x198] sm:$0xff]
    %v83 = vld [vmem:[#allocation2 + $0x1a0] sm:$0xff]
    %v84 = vld [vmem:[#allocation2 + $0x1a8] sm:$0xff]
    %v85 = vld [vmem:[#allocation2 + $0x1b0] sm:$0xff]
    %v86 = vld [vmem:[#allocation2 + $0x1b8] sm:$0xff]
    %v87 = vld [vmem:[#allocation2 + $0x1c0] sm:$0xff]
    %v88 = vld [vmem:[#allocation2 + $0x1c8] sm:$0xff]
    %v89 = vld [vmem:[#allocation2 + $0x1d0] sm:$0xff]
    %v90 = vld [vmem:[#allocation2 + $0x1d8] sm:$0xff]
    %v91 = vld [vmem:[#allocation2 + $0x1e0] sm:$0xff]
    %v92 = vld [vmem:[#allocation2 + $0x1e8] sm:$0xff]
    %v93 = vld [vmem:[#allocation2 + $0x1f0] sm:$0xff]
    %v94 = vld [vmem:[#allocation2 + $0x1f8] sm:$0xff]
    %v95 = vadd.f32 %v31, %v32
    %96 = vadd.xlane.f32.xlu0 %v95
    %v97 = vpop.xlane.xlu0 %96
    %v98 = vadd.f32 %v33, %v34
    %99 = vadd.xlane.f32.xlu0 %v98
    %v100 = vpop.xlane.xlu0 %99
    %v101 = vadd.f32 %v35, %v36
    %102 = vadd.xlane.f32.xlu0 %v101
    %v103 = vpop.xlane.xlu0 %102
    %v104 = vadd.f32 %v37, %v38
    %105 = vadd.xlane.f32.xlu0 %v104
    %v106 = vpop.xlane.xlu0 %105
    %v107 = vadd.f32 %v39, %v40
    %108 = vadd.xlane.f32.xlu0 %v107
    %v109 = vpop.xlane.xlu0 %108
    %v110 = vadd.f32 %v41, %v42
    %111 = vadd.xlane.f32.xlu0 %v110
    %v112 = vpop.xlane.xlu0 %111
    %v113 = vadd.f32 %v43, %v44
    %114 = vadd.xlane.f32.xlu0 %v113
    %v115 = vpop.xlane.xlu0 %114
    %v116 = vadd.f32 %v45, %v46
    %117 = vadd.xlane.f32.xlu0 %v116
    %v118 = vpop.xlane.xlu0 %117
    %v119 = vadd.f32 %v47, %v48
    %120 = vadd.xlane.f32.xlu0 %v119
    %v121 = vpop.xlane.xlu0 %120
    %v122 = vadd.f32 %v49, %v50
    %123 = vadd.xlane.f32.xlu0 %v122
    %v124 = vpop.xlane.xlu0 %123
    %v125 = vadd.f32 %v51, %v52
    %126 = vadd.xlane.f32.xlu0 %v125
    %v127 = vpop.xlane.xlu0 %126
    %v128 = vadd.f32 %v53, %v54
    %129 = vadd.xlane.f32.xlu0 %v128
    %v130 = vpop.xlane.xlu0 %129
    %v131 = vadd.f32 %v55, %v56
    %132 = vadd.xlane.f32.xlu0 %v131
    %v133 = vpop.xlane.xlu0 %132
    %v134 = vadd.f32 %v57, %v58
    %135 = vadd.xlane.f32.xlu0 %v134
    %v136 = vpop.xlane.xlu0 %135
    %v137 = vadd.f32 %v59, %v60
    %138 = vadd.xlane.f32.xlu0 %v137
    %v139 = vpop.xlane.xlu0 %138
    %v140 = vadd.f32 %v61, %v62
    %141 = vadd.xlane.f32.xlu0 %v140
    %v142 = vpop.xlane.xlu0 %141
    %v143 = vadd.f32 %v63, %v64
    %144 = vadd.xlane.f32.xlu0 %v143
    %v145 = vpop.xlane.xlu0 %144
    %v146 = vadd.f32 %v65, %v66
    %147 = vadd.xlane.f32.xlu0 %v146
    %v148 = vpop.xlane.xlu0 %147
    %v149 = vadd.f32 %v67, %v68
    %150 = vadd.xlane.f32.xlu0 %v149
    %v151 = vpop.xlane.xlu0 %150
    %v152 = vadd.f32 %v69, %v70
    %153 = vadd.xlane.f32.xlu0 %v152
    %v154 = vpop.xlane.xlu0 %153
    %v155 = vadd.f32 %v71, %v72
    %156 = vadd.xlane.f32.xlu0 %v155
    %v157 = vpop.xlane.xlu0 %156
    %v158 = vadd.f32 %v73, %v74
    %159 = vadd.xlane.f32.xlu0 %v158
    %v160 = vpop.xlane.xlu0 %159
    %v161 = vadd.f32 %v75, %v76
    %162 = vadd.xlane.f32.xlu0 %v161
    %v163 = vpop.xlane.xlu0 %162
    %v164 = vadd.f32 %v77, %v78
    %165 = vadd.xlane.f32.xlu0 %v164
    %v166 = vpop.xlane.xlu0 %165
    %v167 = vadd.f32 %v79, %v80
    %168 = vadd.xlane.f32.xlu0 %v167
    %v169 = vpop.xlane.xlu0 %168
    %v170 = vadd.f32 %v81, %v82
    %171 = vadd.xlane.f32.xlu0 %v170
    %v172 = vpop.xlane.xlu0 %171
    %v173 = vadd.f32 %v83, %v84
    %174 = vadd.xlane.f32.xlu0 %v173
    %v175 = vpop.xlane.xlu0 %174
    %v176 = vadd.f32 %v85, %v86
    %177 = vadd.xlane.f32.xlu0 %v176
    %v178 = vpop.xlane.xlu0 %177
    %v179 = vadd.f32 %v87, %v88
    %180 = vadd.xlane.f32.xlu0 %v179
    %v181 = vpop.xlane.xlu0 %180
    %v182 = vadd.f32 %v89, %v90
    %183 = vadd.xlane.f32.xlu0 %v182
    %v184 = vpop.xlane.xlu0 %183
    %v185 = vadd.f32 %v91, %v92
    %186 = vadd.xlane.f32.xlu0 %v185
    %v187 = vpop.xlane.xlu0 %186
    %v188 = vadd.f32 %v93, %v94
    %189 = vadd.xlane.f32.xlu0 %v188
    %v190 = vpop.xlane.xlu0 %189
    %v191 = vmul.f32 %v97, 0.00390625
    %v192 = vmul.f32 %v100, 0.00390625
    %v193 = vmul.f32 %v103, 0.00390625
    %v194 = vmul.f32 %v106, 0.00390625
    %v195 = vmul.f32 %v109, 0.00390625
    %v196 = vmul.f32 %v112, 0.00390625
    %v197 = vmul.f32 %v115, 0.00390625
    %v198 = vmul.f32 %v118, 0.00390625
    %v199 = vmul.f32 %v121, 0.00390625
    %v200 = vmul.f32 %v124, 0.00390625
    %v201 = vmul.f32 %v127, 0.00390625
    %v202 = vmul.f32 %v130, 0.00390625
    %v203 = vmul.f32 %v133, 0.00390625
    %v204 = vmul.f32 %v136, 0.00390625
    %v205 = vmul.f32 %v139, 0.00390625
    %v206 = vmul.f32 %v142, 0.00390625
    %v207 = vmul.f32 %v145, 0.00390625
    %v208 = vmul.f32 %v148, 0.00390625
    %v209 = vmul.f32 %v151, 0.00390625
    %v210 = vmul.f32 %v154, 0.00390625
    %v211 = vmul.f32 %v157, 0.00390625
    %v212 = vmul.f32 %v160, 0.00390625
    %v213 = vmul.f32 %v163, 0.00390625
    %v214 = vmul.f32 %v166, 0.00390625
    %v215 = vmul.f32 %v169, 0.00390625
    %v216 = vmul.f32 %v172, 0.00390625
    %v217 = vmul.f32 %v175, 0.00390625
    %v218 = vmul.f32 %v178, 0.00390625
    %v219 = vmul.f32 %v181, 0.00390625
    %v220 = vmul.f32 %v184, 0.00390625
    %v221 = vmul.f32 %v187, 0.00390625
    %v222 = vmul.f32 %v190, 0.00390625
    %v223 = vld [vmem:[%s1] sm:$0xff]
    %v224 = vld [vmem:[%s1 + $0x8] sm:$0xff]
    %v225 = vld [vmem:[%s1 + $0x10] sm:$0xff]
    %v226 = vld [vmem:[%s1 + $0x18] sm:$0xff]
    %v227 = vld [vmem:[%s1 + $0x20] sm:$0xff]
    %v228 = vld [vmem:[%s1 + $0x28] sm:$0xff]
    %v229 = vld [vmem:[%s1 + $0x30] sm:$0xff]
    %v230 = vld [vmem:[%s1 + $0x38] sm:$0xff]
    %v263 = vlaneseq
    %v264 = vand.u32 %v263, 127
    %v265 = vperm.slane %v191, %v264
    %v266 = vadd.s32 %v264, 4294967288
    %v267 = vperm.slane %v192, %v266
    %vm268 = vcmask 130112
    %v269 = vsel %vm268, %v267, %v265
    %v270 = vadd.s32 %v264, 4294967280
    %v271 = vperm.slane %v193, %v270
    %vm272 = vcmask 195712
    %v273 = vsel %vm272, %v271, %v269
    %v274 = vadd.s32 %v264, 4294967272
    %v275 = vperm.slane %v194, %v274
    %vm276 = vcmask 261312
    %v277 = vsel %vm276, %v275, %v273
    %v278 = vadd.s32 %v264, 4294967264
    %v279 = vperm.slane %v195, %v278
    %vm280 = vcmask 326912
    %v281 = vsel %vm280, %v279, %v277
    %v282 = vadd.s32 %v264, 4294967256
    %v283 = vperm.slane %v196, %v282
    %vm284 = vcmask 392512
    %v285 = vsel %vm284, %v283, %v281
    %v286 = vadd.s32 %v264, 4294967248
    %v287 = vperm.slane %v197, %v286
    %vm288 = vcmask 458112
    %v289 = vsel %vm288, %v287, %v285
    %v290 = vadd.s32 %v264, 4294967240
    %v291 = vperm.slane %v198, %v290
    %vm292 = vcmask 523712
    %v293 = vsel %vm292, %v291, %v289
    %v294 = vperm.slane %v199, %v264
    %v295 = vperm.slane %v200, %v266
    %v296 = vsel %vm268, %v295, %v294
    %v297 = vperm.slane %v201, %v270
    %v298 = vsel %vm272, %v297, %v296
    %v299 = vperm.slane %v202, %v274
    %v300 = vsel %vm276, %v299, %v298
    %v301 = vperm.slane %v203, %v278
    %v302 = vsel %vm280, %v301, %v300
    %v303 = vperm.slane %v204, %v282
    %v304 = vsel %vm284, %v303, %v302
    %v305 = vperm.slane %v205, %v286
    %v306 = vsel %vm288, %v305, %v304
    %v307 = vperm.slane %v206, %v290
    %v308 = vsel %vm292, %v307, %v306
    %v309 = vperm.slane %v207, %v264
    %v310 = vperm.slane %v208, %v266
    %v311 = vsel %vm268, %v310, %v309
    %v312 = vperm.slane %v209, %v270
    %v313 = vsel %vm272, %v312, %v311
    %v314 = vperm.slane %v210, %v274
    %v315 = vsel %vm276, %v314, %v313
    %v316 = vperm.slane %v211, %v278
    %v317 = vsel %vm280, %v316, %v315
    %v318 = vperm.slane %v212, %v282
    %v319 = vsel %vm284, %v318, %v317
    %v320 = vperm.slane %v213, %v286
    %v321 = vsel %vm288, %v320, %v319
    %v322 = vperm.slane %v214, %v290
    %v323 = vsel %vm292, %v322, %v321
    %v324 = vperm.slane %v215, %v264
    %v325 = vperm.slane %v216, %v266
    %v326 = vsel %vm268, %v325, %v324
    %v327 = vperm.slane %v217, %v270
    %v328 = vsel %vm272, %v327, %v326
    %v329 = vperm.slane %v218, %v274
    %v330 = vsel %vm276, %v329, %v328
    %v331 = vperm.slane %v219, %v278
    %v332 = vsel %vm280, %v331, %v330
    %v333 = vperm.slane %v220, %v282
    %v334 = vsel %vm284, %v333, %v332
    %v335 = vperm.slane %v221, %v286
    %v336 = vsel %vm288, %v335, %v334
    %v337 = vperm.slane %v222, %v290
    %v338 = vsel %vm292, %v337, %v336
    %vm339 = vcmask 1041409
    %v340 = vsel %vm339, %v308, %v293
    %vm341 = vcmask 1042434
    %v342 = vsel %vm341, %v323, %v340
    %vm343 = vcmask 1043459
    %v344 = vsel %vm343, %v338, %v342
    %vm345 = vcmask 523264
    %v346 = vsel %vm345, %v344, 0
    %348 = vmatpush.msra.mxu0 0.0
    %349 = vmatpush.msra.mxu0 0.0
    %350 = vmatpush.msra.mxu0 0.0
    %351 = vmatpush.msra.mxu0 0.0
    %352 = vmatpush.msra.mxu0 0.0
    %353 = vmatpush.msra.mxu0 0.0
    %354 = vmatpush.msra.mxu0 0.0
    %355 = vmatpush.msra.mxu0 0.0
    %356 = vmatpush.msra.mxu0 %v230
    %357 = vmatpush.msra.mxu0 %v229
    %358 = vmatpush.msra.mxu0 %v228
    %359 = vmatpush.msra.mxu0 %v227
    %360 = vmatpush.msra.mxu0 %v226
    %361 = vmatpush.msra.mxu0 %v225
    %362 = vmatpush.msra.mxu0 %v224
    %363 = vmatpush.msra.mxu0 %v223
    %364 = vmatmul.f32.gmra.mxu0 %v346
    %v365 = vpop.f32.mrf.mxu0
    %v366 = vadd.f32 0.0, %v365
    %367 = vdwg.mxu0
    %v368 = vmax.f32 %v366, 0.0
    %v369 = vld [vmem:[%s2] sm:$0xf]
    %vm370 = vcmask 31744
    %v372 = vsel %vm370, %v368, 0
    %vm374 = vcmask 1043456
    %v376 = vsel %vm374, %v369, 0
    %378 = vmatpush.msra.mxu0 0.0
    %379 = vmatpush.msra.mxu0 0.0
    %380 = vmatpush.msra.mxu0 0.0
    %381 = vmatpush.msra.mxu0 0.0
    %382 = vmatpush.msra.mxu0 0.0
    %383 = vmatpush.msra.mxu0 0.0
    %384 = vmatpush.msra.mxu0 0.0
    %385 = vmatpush.msra.mxu0 0.0
    %386 = vmatpush.msra.mxu0 0.0
    %387 = vmatpush.msra.mxu0 0.0
    %388 = vmatpush.msra.mxu0 0.0
    %389 = vmatpush.msra.mxu0 0.0
    %390 = vmatpush.msra.mxu0 0.0
    %391 = vmatpush.msra.mxu0 0.0
    %392 = vmatpush.msra.mxu0 0.0
    %393 = vmatpush.msra.mxu0 %v376
    %394 = vmatmul.f32.gmra.mxu0 %v372
    %v395 = vpop.f32.mrf.mxu0
    %v396 = vadd.f32 0.0, %v395
    %397 = vdwg.mxu0
    %v398 = vxor.u32 %v396, 2147483648
    %v399 = vmul.f32 %v398, 1.442695
    %v400 = vpow.pop %v399
    %v401 = vadd.f32 %v400, 1.0
    %v402 = vrcp.pop %v401
    %v403 = vmul.f32 %v401, %v402
    %v404 = vsub.f32 1.0, %v403
    %v405 = vmul.f32 %v402, %v404
    %v406 = vadd.f32 %v402, %v405
    %vm407 = vweird.f32 %v401
    %vm408 = vweird.f32 %v402
    %vm409 = vmor %vm407, %vm408
    %v410 = vsel %vm409, %v402, %v406
    %v411 = vand.u32 2147483647, %v401
    %vm412 = vcmp.eq.f32.partialorder %v411, 8.507059e+37
    %v413 = vand.u32 %v401, 2147483648
    %v414 = vor.u32 1.1754944e-38, %v413
    %v415 = vsel %vm412, %v414, %v410
    %v416 = vmul.f32 1.0, %v415
    %v417 = vperm.slane %v416, 0
    %v418 = vlaneseq
    %v419 = vshrl.u32 %v418, 7
    %421 = vset.pattern.permute.xlu0 %v419
    %422 = vperm.xlu0 %421, %v417
    %v423 = vpop.permute.xlu0 %422
    %v424 = vlaneseq
    %v425 = vshrl.u32 %v424, 7
    %v426 = vadd.s32 %v425, 8
    %427 = vset.pattern.permute.xlu0 %v426
    %428 = vperm.xlu0 %427, %v417
    %v429 = vpop.permute.xlu0 %428
    %v430 = vlaneseq
    %v431 = vshrl.u32 %v430, 7
    %v432 = vadd.s32 %v431, 16
    %433 = vset.pattern.permute.xlu0 %v432
    %434 = vperm.xlu0 %433, %v417
    %v435 = vpop.permute.xlu0 %434
    %v436 = vlaneseq
    %v437 = vshrl.u32 %v436, 7
    %v438 = vadd.s32 %v437, 24
    %439 = vset.pattern.permute.xlu0 %v438
    %440 = vperm.xlu0 %439, %v417
    %v441 = vpop.permute.xlu0 %440
    %v442 = vlaneseq
    %v443 = vshrl.u32 %v442, 7
    %v444 = vadd.s32 %v443, 32
    %445 = vset.pattern.permute.xlu0 %v444
    %446 = vperm.xlu0 %445, %v417
    %v447 = vpop.permute.xlu0 %446
    %v448 = vlaneseq
    %v449 = vshrl.u32 %v448, 7
    %v450 = vadd.s32 %v449, 40
    %451 = vset.pattern.permute.xlu0 %v450
    %452 = vperm.xlu0 %451, %v417
    %v453 = vpop.permute.xlu0 %452
    %v454 = vlaneseq
    %v455 = vshrl.u32 %v454, 7
    %v456 = vadd.s32 %v455, 48
    %457 = vset.pattern.permute.xlu0 %v456
    %458 = vperm.xlu0 %457, %v417
    %v459 = vpop.permute.xlu0 %458
    %v460 = vlaneseq
    %v461 = vshrl.u32 %v460, 7
    %v462 = vadd.s32 %v461, 56
    %463 = vset.pattern.permute.xlu0 %v462
    %464 = vperm.xlu0 %463, %v417
    %v465 = vpop.permute.xlu0 %464
    %v466 = vperm.slane %v416, 1
    %v467 = vlaneseq
    %v468 = vshrl.u32 %v467, 7
    %470 = vset.pattern.permute.xlu0 %v468
    %471 = vperm.xlu0 %470, %v466
    %v472 = vpop.permute.xlu0 %471
    %v473 = vlaneseq
    %v474 = vshrl.u32 %v473, 7
    %v475 = vadd.s32 %v474, 8
    %476 = vset.pattern.permute.xlu0 %v475
    %477 = vperm.xlu0 %476, %v466
    %v478 = vpop.permute.xlu0 %477
    %v479 = vlaneseq
    %v480 = vshrl.u32 %v479, 7
    %v481 = vadd.s32 %v480, 16
    %482 = vset.pattern.permute.xlu0 %v481
    %483 = vperm.xlu0 %482, %v466
    %v484 = vpop.permute.xlu0 %483
    %v485 = vlaneseq
    %v486 = vshrl.u32 %v485, 7
    %v487 = vadd.s32 %v486, 24
    %488 = vset.pattern.permute.xlu0 %v487
    %489 = vperm.xlu0 %488, %v466
    %v490 = vpop.permute.xlu0 %489
    %v491 = vlaneseq
    %v492 = vshrl.u32 %v491, 7
    %v493 = vadd.s32 %v492, 32
    %494 = vset.pattern.permute.xlu0 %v493
    %495 = vperm.xlu0 %494, %v466
    %v496 = vpop.permute.xlu0 %495
    %v497 = vlaneseq
    %v498 = vshrl.u32 %v497, 7
    %v499 = vadd.s32 %v498, 40
    %500 = vset.pattern.permute.xlu0 %v499
    %501 = vperm.xlu0 %500, %v466
    %v502 = vpop.permute.xlu0 %501
    %v503 = vlaneseq
    %v504 = vshrl.u32 %v503, 7
    %v505 = vadd.s32 %v504, 48
    %506 = vset.pattern.permute.xlu0 %v505
    %507 = vperm.xlu0 %506, %v466
    %v508 = vpop.permute.xlu0 %507
    %v509 = vlaneseq
    %v510 = vshrl.u32 %v509, 7
    %v511 = vadd.s32 %v510, 56
    %512 = vset.pattern.permute.xlu0 %v511
    %513 = vperm.xlu0 %512, %v466
    %v514 = vpop.permute.xlu0 %513
    %v515 = vperm.slane %v416, 2
    %v516 = vlaneseq
    %v517 = vshrl.u32 %v516, 7
    %519 = vset.pattern.permute.xlu0 %v517
    %520 = vperm.xlu0 %519, %v515
    %v521 = vpop.permute.xlu0 %520
    %v522 = vlaneseq
    %v523 = vshrl.u32 %v522, 7
    %v524 = vadd.s32 %v523, 8
    %525 = vset.pattern.permute.xlu0 %v524
    %526 = vperm.xlu0 %525, %v515
    %v527 = vpop.permute.xlu0 %526
    %v528 = vlaneseq
    %v529 = vshrl.u32 %v528, 7
    %v530 = vadd.s32 %v529, 16
    %531 = vset.pattern.permute.xlu0 %v530
    %532 = vperm.xlu0 %531, %v515
    %v533 = vpop.permute.xlu0 %532
    %v534 = vlaneseq
    %v535 = vshrl.u32 %v534, 7
    %v536 = vadd.s32 %v535, 24
    %537 = vset.pattern.permute.xlu0 %v536
    %538 = vperm.xlu0 %537, %v515
    %v539 = vpop.permute.xlu0 %538
    %v540 = vlaneseq
    %v541 = vshrl.u32 %v540, 7
    %v542 = vadd.s32 %v541, 32
    %543 = vset.pattern.permute.xlu0 %v542
    %544 = vperm.xlu0 %543, %v515
    %v545 = vpop.permute.xlu0 %544
    %v546 = vlaneseq
    %v547 = vshrl.u32 %v546, 7
    %v548 = vadd.s32 %v547, 40
    %549 = vset.pattern.permute.xlu0 %v548
    %550 = vperm.xlu0 %549, %v515
    %v551 = vpop.permute.xlu0 %550
    %v552 = vlaneseq
    %v553 = vshrl.u32 %v552, 7
    %v554 = vadd.s32 %v553, 48
    %555 = vset.pattern.permute.xlu0 %v554
    %556 = vperm.xlu0 %555, %v515
    %v557 = vpop.permute.xlu0 %556
    %v558 = vlaneseq
    %v559 = vshrl.u32 %v558, 7
    %v560 = vadd.s32 %v559, 56
    %561 = vset.pattern.permute.xlu0 %v560
    %562 = vperm.xlu0 %561, %v515
    %v563 = vpop.permute.xlu0 %562
    %v564 = vperm.slane %v416, 3
    %v565 = vlaneseq
    %v566 = vshrl.u32 %v565, 7
    %568 = vset.pattern.permute.xlu0 %v566
    %569 = vperm.xlu0 %568, %v564
    %v570 = vpop.permute.xlu0 %569
    %v571 = vlaneseq
    %v572 = vshrl.u32 %v571, 7
    %v573 = vadd.s32 %v572, 8
    %574 = vset.pattern.permute.xlu0 %v573
    %575 = vperm.xlu0 %574, %v564
    %v576 = vpop.permute.xlu0 %575
    %v577 = vlaneseq
    %v578 = vshrl.u32 %v577, 7
    %v579 = vadd.s32 %v578, 16
    %580 = vset.pattern.permute.xlu0 %v579
    %581 = vperm.xlu0 %580, %v564
    %v582 = vpop.permute.xlu0 %581
    %v583 = vlaneseq
    %v584 = vshrl.u32 %v583, 7
    %v585 = vadd.s32 %v584, 24
    %586 = vset.pattern.permute.xlu0 %v585
    %587 = vperm.xlu0 %586, %v564
    %v588 = vpop.permute.xlu0 %587
    %v589 = vlaneseq
    %v590 = vshrl.u32 %v589, 7
    %v591 = vadd.s32 %v590, 32
    %592 = vset.pattern.permute.xlu0 %v591
    %593 = vperm.xlu0 %592, %v564
    %v594 = vpop.permute.xlu0 %593
    %v595 = vlaneseq
    %v596 = vshrl.u32 %v595, 7
    %v597 = vadd.s32 %v596, 40
    %598 = vset.pattern.permute.xlu0 %v597
    %599 = vperm.xlu0 %598, %v564
    %v600 = vpop.permute.xlu0 %599
    %v601 = vlaneseq
    %v602 = vshrl.u32 %v601, 7
    %v603 = vadd.s32 %v602, 48
    %604 = vset.pattern.permute.xlu0 %v603
    %605 = vperm.xlu0 %604, %v564
    %v606 = vpop.permute.xlu0 %605
    %v607 = vlaneseq
    %v608 = vshrl.u32 %v607, 7
    %v609 = vadd.s32 %v608, 56
    %610 = vset.pattern.permute.xlu0 %v609
    %611 = vperm.xlu0 %610, %v564
    %v612 = vpop.permute.xlu0 %611
    %v613 = vmul.f32 %v31, %v423
    %v614 = vmul.f32 %v32, %v423
    %v615 = vmul.f32 %v33, %v429
    %v616 = vmul.f32 %v34, %v429
    %v617 = vmul.f32 %v35, %v435
    %v618 = vmul.f32 %v36, %v435
    %v619 = vmul.f32 %v37, %v441
    %v620 = vmul.f32 %v38, %v441
    %v621 = vmul.f32 %v39, %v447
    %v622 = vmul.f32 %v40, %v447
    %v623 = vmul.f32 %v41, %v453
    %v624 = vmul.f32 %v42, %v453
    %v625 = vmul.f32 %v43, %v459
    %v626 = vmul.f32 %v44, %v459
    %v627 = vmul.f32 %v45, %v465
    %v628 = vmul.f32 %v46, %v465
    %v629 = vmul.f32 %v47, %v472
    %v630 = vmul.f32 %v48, %v472
    %v631 = vmul.f32 %v49, %v478
    %v632 = vmul.f32 %v50, %v478
    %v633 = vmul.f32 %v51, %v484
    %v634 = vmul.f32 %v52, %v484
    %v635 = vmul.f32 %v53, %v490
    %v636 = vmul.f32 %v54, %v490
    %v637 = vmul.f32 %v55, %v496
    %v638 = vmul.f32 %v56, %v496
    %v639 = vmul.f32 %v57, %v502
    %v640 = vmul.f32 %v58, %v502
    %v641 = vmul.f32 %v59, %v508
    %v642 = vmul.f32 %v60, %v508
    %v643 = vmul.f32 %v61, %v514
    %v644 = vmul.f32 %v62, %v514
    %v645 = vmul.f32 %v63, %v521
    %v646 = vmul.f32 %v64, %v521
    %v647 = vmul.f32 %v65, %v527
    %v648 = vmul.f32 %v66, %v527
    %v649 = vmul.f32 %v67, %v533
    %v650 = vmul.f32 %v68, %v533
    %v651 = vmul.f32 %v69, %v539
    %v652 = vmul.f32 %v70, %v539
    %v653 = vmul.f32 %v71, %v545
    %v654 = vmul.f32 %v72, %v545
    %v655 = vmul.f32 %v73, %v551
    %v656 = vmul.f32 %v74, %v551
    %v657 = vmul.f32 %v75, %v557
    %v658 = vmul.f32 %v76, %v557
    %v659 = vmul.f32 %v77, %v563
    %v660 = vmul.f32 %v78, %v563
    %v661 = vmul.f32 %v79, %v570
    %v662 = vmul.f32 %v80, %v570
    %v663 = vmul.f32 %v81, %v576
    %v664 = vmul.f32 %v82, %v576
    %v665 = vmul.f32 %v83, %v582
    %v666 = vmul.f32 %v84, %v582
    %v667 = vmul.f32 %v85, %v588
    %v668 = vmul.f32 %v86, %v588
    %v669 = vmul.f32 %v87, %v594
    %v670 = vmul.f32 %v88, %v594
    %v671 = vmul.f32 %v89, %v600
    %v672 = vmul.f32 %v90, %v600
    %v673 = vmul.f32 %v91, %v606
    %v674 = vmul.f32 %v92, %v606
    %v675 = vmul.f32 %v93, %v612
    %v676 = vmul.f32 %v94, %v612
    %677 = vst [vmem:[#allocation5] sm:$0xff] %v613
    %678 = vst [vmem:[#allocation5 + $0x8] sm:$0xff] %v614
    %679 = vst [vmem:[#allocation5 + $0x10] sm:$0xff] %v615
    %680 = vst [vmem:[#allocation5 + $0x18] sm:$0xff] %v616
    %681 = vst [vmem:[#allocation5 + $0x20] sm:$0xff] %v617
    %682 = vst [vmem:[#allocation5 + $0x28] sm:$0xff] %v618
    %683 = vst [vmem:[#allocation5 + $0x30] sm:$0xff] %v619
    %684 = vst [vmem:[#allocation5 + $0x38] sm:$0xff] %v620
    %685 = vst [vmem:[#allocation5 + $0x40] sm:$0xff] %v621
    %686 = vst [vmem:[#allocation5 + $0x48] sm:$0xff] %v622
    %687 = vst [vmem:[#allocation5 + $0x50] sm:$0xff] %v623
    %688 = vst [vmem:[#allocation5 + $0x58] sm:$0xff] %v624
    %689 = vst [vmem:[#allocation5 + $0x60] sm:$0xff] %v625
    %690 = vst [vmem:[#allocation5 + $0x68] sm:$0xff] %v626
    %691 = vst [vmem:[#allocation5 + $0x70] sm:$0xff] %v627
    %692 = vst [vmem:[#allocation5 + $0x78] sm:$0xff] %v628
    %693 = vst [vmem:[#allocation5 + $0x80] sm:$0xff] %v629
    %694 = vst [vmem:[#allocation5 + $0x88] sm:$0xff] %v630
    %695 = vst [vmem:[#allocation5 + $0x90] sm:$0xff] %v631
    %696 = vst [vmem:[#allocation5 + $0x98] sm:$0xff] %v632
    %697 = vst [vmem:[#allocation5 + $0xa0] sm:$0xff] %v633
    %698 = vst [vmem:[#allocation5 + $0xa8] sm:$0xff] %v634
    %699 = vst [vmem:[#allocation5 + $0xb0] sm:$0xff] %v635
    %700 = vst [vmem:[#allocation5 + $0xb8] sm:$0xff] %v636
    %701 = vst [vmem:[#allocation5 + $0xc0] sm:$0xff] %v637
    %702 = vst [vmem:[#allocation5 + $0xc8] sm:$0xff] %v638
    %703 = vst [vmem:[#allocation5 + $0xd0] sm:$0xff] %v639
    %704 = vst [vmem:[#allocation5 + $0xd8] sm:$0xff] %v640
    %705 = vst [vmem:[#allocation5 + $0xe0] sm:$0xff] %v641
    %706 = vst [vmem:[#allocation5 + $0xe8] sm:$0xff] %v642
    %707 = vst [vmem:[#allocation5 + $0xf0] sm:$0xff] %v643
    %708 = vst [vmem:[#allocation5 + $0xf8] sm:$0xff] %v644
    %709 = vst [vmem:[#allocation5 + $0x100] sm:$0xff] %v645
    %710 = vst [vmem:[#allocation5 + $0x108] sm:$0xff] %v646
    %711 = vst [vmem:[#allocation5 + $0x110] sm:$0xff] %v647
    %712 = vst [vmem:[#allocation5 + $0x118] sm:$0xff] %v648
    %713 = vst [vmem:[#allocation5 + $0x120] sm:$0xff] %v649
    %714 = vst [vmem:[#allocation5 + $0x128] sm:$0xff] %v650
    %715 = vst [vmem:[#allocation5 + $0x130] sm:$0xff] %v651
    %716 = vst [vmem:[#allocation5 + $0x138] sm:$0xff] %v652
    %717 = vst [vmem:[#allocation5 + $0x140] sm:$0xff] %v653
    %718 = vst [vmem:[#allocation5 + $0x148] sm:$0xff] %v654
    %719 = vst [vmem:[#allocation5 + $0x150] sm:$0xff] %v655
    %720 = vst [vmem:[#allocation5 + $0x158] sm:$0xff] %v656
    %721 = vst [vmem:[#allocation5 + $0x160] sm:$0xff] %v657
    %722 = vst [vmem:[#allocation5 + $0x168] sm:$0xff] %v658
    %723 = vst [vmem:[#allocation5 + $0x170] sm:$0xff] %v659
    %724 = vst [vmem:[#allocation5 + $0x178] sm:$0xff] %v660
    %725 = vst [vmem:[#allocation5 + $0x180] sm:$0xff] %v661
    %726 = vst [vmem:[#allocation5 + $0x188] sm:$0xff] %v662
    %727 = vst [vmem:[#allocation5 + $0x190] sm:$0xff] %v663
    %728 = vst [vmem:[#allocation5 + $0x198] sm:$0xff] %v664
    %729 = vst [vmem:[#allocation5 + $0x1a0] sm:$0xff] %v665
    %730 = vst [vmem:[#allocation5 + $0x1a8] sm:$0xff] %v666
    %731 = vst [vmem:[#allocation5 + $0x1b0] sm:$0xff] %v667
    %732 = vst [vmem:[#allocation5 + $0x1b8] sm:$0xff] %v668
    %733 = vst [vmem:[#allocation5 + $0x1c0] sm:$0xff] %v669
    %734 = vst [vmem:[#allocation5 + $0x1c8] sm:$0xff] %v670
    %735 = vst [vmem:[#allocation5 + $0x1d0] sm:$0xff] %v671
    %736 = vst [vmem:[#allocation5 + $0x1d8] sm:$0xff] %v672
    %737 = vst [vmem:[#allocation5 + $0x1e0] sm:$0xff] %v673
    %738 = vst [vmem:[#allocation5 + $0x1e8] sm:$0xff] %v674
    %739 = vst [vmem:[#allocation5 + $0x1f0] sm:$0xff] %v675
    %740 = vst [vmem:[#allocation5 + $0x1f8] sm:$0xff] %v676
    // Predicated region
    $region18: #{tpu_custom_call.1} parent=1 // pred_check
      _
    $region19: #{tpu_custom_call.1} parent=1 // pred_check_branch
      %742 = sbr.rel (0) target = $region21
    $region20: #{tpu_custom_call.1} parent=1 // pred_region
      %744 = vsyncadd [#allocation4], 0
      %s745 = sshll.u32 [#allocation5], 4
      %s746 = int_to_ptr.vmem [resolvable:$true] %s745
      %s747 = sshll.u32 %s3, 4
      %s748 = int_to_ptr.hbm [resolvable:$true] %s747
      %753 = dma.vmem_to_hbm [thread:$0]  %s746, 8192, %s748, [#allocation4], 256, 256, 16
    $region21: #{tpu_custom_call.1} parent=1 // pred_fallthru
      _
    // Predicated region
    $region22: #{tpu_custom_call.1} parent=1 // pred_check
      _
    $region23: #{tpu_custom_call.1} parent=1 // pred_check_branch
      %755 = sbr.rel (0) target = $region25
    $region24: #{tpu_custom_call.1} parent=1 // pred_region
      %757 = dma.done [#allocation4], 8192
    $region25: #{tpu_custom_call.1} parent=1 // pred_fallthru
      _
    %758 = vsyncpa [#allocation3], 1
    %759 = vsyncpa [#allocation4], 1

</llo_original>
